<compile_context>
chip_gen: v6e
topology: v6e:2x2x1
jax: 0.10.0
libtpu: 0.0.40
codegen_flags: <defaults>
</compile_context>

<pallas_src>
import functools
import math

import jax
import jax.numpy as jnp
from jax.experimental import pallas as pl
from jax.experimental.pallas import tpu as pltpu

_LANE = 128
_SUBLANE = 8


def _round_up(v, m):
    return ((v + m - 1) // m) * m


def _vmem_capacity_bytes():
    """Best-effort per-core VMEM query; conservative fallback (v7x: 64 MiB)."""
    try:
        cap = getattr(pltpu.get_tpu_info(), "vmem_capacity_bytes", None)
        if cap:
            return int(cap)
    except Exception:
        pass
    return 64 * 1024 * 1024


def _fourier_kernel_2d(x_ref, b_ref, o_ref, *, out_cols):
    # Fused step: one matmul; sin half + cos half written from the same x_proj
    # vregs into one lane-dense (block_n, 2*out_cols) output tile.
    x_proj = jnp.dot(x_ref[...], b_ref[...], preferred_element_type=jnp.float32)
    o_ref[:, :out_cols] = jnp.sin(x_proj).astype(o_ref.dtype)
    o_ref[:, out_cols:] = jnp.cos(x_proj).astype(o_ref.dtype)


def _fourier_kernel_3d(x_ref, b_ref, o_ref):
    # General path: output block is (block_n, 2, tile_out); plane 0 = sin,
    # plane 1 = cos.  The wrapper's reshape (N, 2, out) -> (N, 2*out) is free.
    x_proj = jnp.dot(x_ref[...], b_ref[...], preferred_element_type=jnp.float32)
    o_ref[:, 0, :] = jnp.sin(x_proj).astype(o_ref.dtype)
    o_ref[:, 1, :] = jnp.cos(x_proj).astype(o_ref.dtype)


def fourier_layer(x, B, *, block_n=None, tile_out=None, out_dtype=None,
                  vmem_budget_bytes=None):
    """Random Fourier features: concat([sin(2*pi*x @ B), cos(2*pi*x @ B)], -1).

    x: (N, in_features), B: (in_features, out_features).
    Returns (N, 2*out_features) in `out_dtype` (default: x.dtype).  Passing
    out_dtype=jnp.bfloat16 halves the dominant HBM write stream when the
    consumer tolerates it.
    """
    N, in_features = x.shape
    in_b, out_features = B.shape
    assert in_b == in_features, "B must be (in_features, out_features)"
    out_dtype = jnp.dtype(out_dtype or x.dtype)

    # Keep bf16 inputs in bf16 (MXU-native); anything else computes in f32.
    compute_dtype = jnp.bfloat16 if x.dtype == jnp.bfloat16 else jnp.float32
    in_bytes = jnp.dtype(compute_dtype).itemsize
    out_bytes = out_dtype.itemsize

    # Fold 2*pi into the constant weight once (one extra rounding; with large
    # |x @ B| the f32 trig range reduction dominates any error from the fold).
    B2pi = ((2.0 * math.pi) * B.astype(jnp.float32)).astype(compute_dtype)
    x_in = x.astype(compute_dtype)

    # ---- VMEM budget keyed off the chip (v7x: ~28 MiB, v5e/v6e: ~57 MiB). ----
    vmem_cap = _vmem_capacity_bytes()
    if vmem_budget_bytes is None:
        vmem_budget_bytes = min(int(0.45 * vmem_cap), 96 * 1024 * 1024)

    # ---- Feature tiling: lane-dense multiples of 128. ----
    out_pad = _round_up(out_features, _LANE)
    if tile_out is None:
        tile_out = out_pad if out_pad <= 4096 else 2048
    else:
        tile_out = _round_up(tile_out, _LANE)
    # Shrink the B tile if it would eat too much of the budget (in_features is
    # tiny for this module, so this rarely triggers).
    while (2 * in_features * tile_out * in_bytes > vmem_budget_bytes // 2
           and tile_out > _LANE):
        tile_out = _round_up(tile_out // 2, _LANE)
    out_pad = _round_up(out_pad, tile_out)
    num_out_tiles = out_pad // tile_out

    # Fast path: single feature tile and no column padding -> emit the torch
    # concat layout directly as one 2-D lane-dense block per row tile.
    use_2d = (num_out_tiles == 1) and (out_pad == out_features)

    # ---- Row tile from the VMEM budget (x / B / output double-buffered). ----
    feat_cols = out_pad if use_2d else tile_out
    # 8*tile_out is a conservative stand-in for the (block_n, 2, tile_out)
    # block's footprint (possible sublane padding of the size-2 axis).
    out_cols_safety = 2 * out_pad if use_2d else _SUBLANE * tile_out
    fixed = 2 * in_features * feat_cols * in_bytes
    per_row = 2 * in_features * in_bytes + 2 * out_cols_safety * out_bytes
    if block_n is None:
        block_n = max(8, min(1024, (vmem_budget_bytes - fixed) // per_row))
    block_n = max(8, (int(block_n) // 8) * 8)
    block_n = min(block_n, _round_up(N, 8))
    n_pad = _round_up(N, block_n)

    # ---- Pad inputs; zero rows/cols produce sin=0/cos=1 garbage that is
    #      sliced off below, never returned. ----
    if n_pad != N:
        x_in = jnp.pad(x_in, ((0, n_pad - N), (0, 0)))
    if out_pad != out_features:
        B2pi = jnp.pad(B2pi, ((0, 0), (0, out_pad - out_features)))

    # vmem_limit derived from the actual footprint + margin, capped well under
    # physical VMEM (v7x: <= 48 MiB, 128-MiB chips: <= 96 MiB).
    footprint = (2 * block_n * in_features * in_bytes
                 + fixed
                 + 2 * block_n * out_cols_safety * out_bytes)
    vmem_limit = int(min(max(footprint + 12 * 1024 * 1024, 24 * 1024 * 1024),
                         int(0.75 * vmem_cap)))

    cost = pl.CostEstimate(
        flops=2 * n_pad * in_features * out_pad,
        transcendentals=2 * n_pad * out_pad,
        bytes_accessed=(n_pad * in_features * in_bytes
                        + in_features * out_pad * in_bytes
                        + n_pad * 2 * out_pad * out_bytes),
    )

    if use_2d:
        y = pl.pallas_call(
            functools.partial(_fourier_kernel_2d, out_cols=out_pad),
            out_shape=jax.ShapeDtypeStruct((n_pad, 2 * out_pad), out_dtype),
            grid_spec=pltpu.PrefetchScalarGridSpec(
                num_scalar_prefetch=0,
                grid=(n_pad // block_n,),
                in_specs=[
                    pl.BlockSpec((block_n, in_features), lambda i: (i, 0)),
                    # Constant block index -> B DMA'd once, stays resident.
                    pl.BlockSpec((in_features, out_pad), lambda i: (0, 0)),
                ],
                out_specs=pl.BlockSpec((block_n, 2 * out_pad), lambda i: (i, 0)),
            ),
            compiler_params=pltpu.CompilerParams(
                dimension_semantics=("parallel",),
                vmem_limit_bytes=vmem_limit,
            ),
            cost_estimate=cost,
        )(x_in, B2pi)
        return y if n_pad == N else y[:N]

    # General path: (n_pad, 2, out_pad) output; final reshape is contiguous/free.
    y3 = pl.pallas_call(
        _fourier_kernel_3d,
        out_shape=jax.ShapeDtypeStruct((n_pad, 2, out_pad), out_dtype),
        grid_spec=pltpu.PrefetchScalarGridSpec(
            num_scalar_prefetch=0,
            grid=(n_pad // block_n, num_out_tiles),
            in_specs=[
                # x: constant block index along the feature axis -> one DMA per
                # row tile, reused for every feature tile.
                pl.BlockSpec((block_n, in_features), lambda i, j: (i, 0)),
                pl.BlockSpec((in_features, tile_out), lambda i, j: (0, j)),
            ],
            out_specs=pl.BlockSpec((block_n, 2, tile_out),
                                   lambda i, j: (i, 0, j)),
        ),
        compiler_params=pltpu.CompilerParams(
            # Row axis parallel only: megacore (v7x) splits rows, preserving
            # per-core x reuse / B residency along the feature axis.
            dimension_semantics=("parallel", "arbitrary"),
            vmem_limit_bytes=vmem_limit,
        ),
        cost_estimate=cost,
    )(x_in, B2pi)

    if n_pad != N or out_pad != out_features:
        # Single slice drops row/column padding; padded columns never escape.
        y3 = y3[:N, :, :out_features]
    return y3.reshape(N, 2 * out_features)


def fourier_layer_ref(x, B):
    x_proj = jnp.matmul(2.0 * math.pi * x, B)
    return jnp.concatenate([jnp.sin(x_proj), jnp.cos(x_proj)], axis=-1)


if __name__ == "__main__":
    key = jax.random.PRNGKey(0)
    k_x, k_B = jax.random.split(key)

    # Shapes consistent with the IK-solver module: pose input of 8 dims,
    # 128 Fourier features, batch 16, scale 10 (B = randn(in, out) * scale).
    N, in_features, out_features, scale = 16, 8, 128, 10.0
    x = jax.random.normal(k_x, (N, in_features), dtype=jnp.float32)
    B = jax.random.normal(k_B, (in_features, out_features), dtype=jnp.float32) * scale

    out = jax.block_until_ready(fourier_layer(x, B))
    ref = fourier_layer_ref(x, B)
    assert out.shape == (N, 2 * out_features)
    # 2*pi is folded into B (one extra rounding); with |x_proj| up to ~6e2 the
    # f32 trig argument shifts by a few ulps -> slightly loose tolerance.
    assert jnp.allclose(out, ref, atol=2e-3, rtol=2e-3), "mismatch vs reference"

    # Ragged case: N not a multiple of 8, out_features not a multiple of 128
    # (exercises the padded 3-D output path + slice/reshape).
    N2, out2 = 10, 100
    x2 = jax.random.normal(k_x, (N2, in_features), dtype=jnp.float32)
    B2 = jax.random.normal(k_B, (in_features, out2), dtype=jnp.float32) * scale
    out_r = jax.block_until_ready(fourier_layer(x2, B2))
    ref_r = fourier_layer_ref(x2, B2)
    assert out_r.shape == (N2, 2 * out2)
    assert jnp.allclose(out_r, ref_r, atol=2e-3, rtol=2e-3), "ragged mismatch"

    print("KERNEL_OK")
</pallas_src>

<mosaic_0001>
module attributes {stable_mosaic.version = 11 : i64} {
  func.func @_fourier_kernel_2d(%arg0: i32, %arg1: memref<16x8xf32, #tpu.memory_space<vmem>>, %arg2: memref<8x128xf32, #tpu.memory_space<vmem>>, %arg3: memref<16x256xf32, #tpu.memory_space<vmem>>) attributes {dimension_semantics = [#tpu.dimension_semantics<parallel>], iteration_bounds = array<i64: 1>, scalar_prefetch = 0 : i64, scratch_operands = 0 : i64, tpu.core_type = #tpu.core_type<tc>, window_params = [{transform_indices = @transform_0, window_bounds = array<i64: 16, 8>}, {pipeline_mode = #tpu.pipeline_mode<synchronous>, transform_indices = @transform_1, window_bounds = array<i64: 8, 128>}, {transform_indices = @transform_2, window_bounds = array<i64: 16, 256>}]} {
    %c0 = arith.constant 0 : index
    %c0_0 = arith.constant 0 : index
    %0 = vector.load %arg1[%c0, %c0_0] : memref<16x8xf32, #tpu.memory_space<vmem>>, vector<16x8xf32>
    %c0_1 = arith.constant 0 : index
    %c0_2 = arith.constant 0 : index
    %1 = vector.load %arg2[%c0_1, %c0_2] : memref<8x128xf32, #tpu.memory_space<vmem>>, vector<8x128xf32>
    %cst = arith.constant dense<0.000000e+00> : vector<16x128xf32>
    %2 = tpu.matmul %0, %1, %cst {dimension_numbers = #tpu.dot_dimension_numbers<[1], [0], [0], [1], [0, 0, 1, 1], [], []>} : vector<16x8xf32>, vector<8x128xf32>, vector<16x128xf32> -> vector<16x128xf32>
    %3 = math.sin %2 : vector<16x128xf32>
    %c0_3 = arith.constant 0 : index
    %c0_4 = arith.constant 0 : index
    %4 = vector.load %arg3[%c0_3, %c0_4] : memref<16x256xf32, #tpu.memory_space<vmem>>, vector<16x128xf32>
    tpu.vector_store %arg3[%c0_3, %c0_4], %3 {strides = array<i32>} : memref<16x256xf32, #tpu.memory_space<vmem>>, vector<16x128xf32>,
    %5 = math.cos %2 : vector<16x128xf32>
    %c0_5 = arith.constant 0 : index
    %c128 = arith.constant 128 : index
    %6 = vector.load %arg3[%c0_5, %c128] : memref<16x256xf32, #tpu.memory_space<vmem>>, vector<16x128xf32>
    tpu.vector_store %arg3[%c0_5, %c128], %5 {strides = array<i32>} : memref<16x256xf32, #tpu.memory_space<vmem>>, vector<16x128xf32>,
    return
  }
  func.func @transform_0(%arg0: i32) -> (i32, i32) {
    %c0_i32 = arith.constant 0 : i32
    %c0_i32_0 = arith.constant 0 : i32
    return %arg0, %c0_i32 : i32, i32
  }
  func.func @transform_1(%arg0: i32) -> (i32, i32) {
    %c0_i32 = arith.constant 0 : i32
    %c0_i32_0 = arith.constant 0 : i32
    %c0_i32_1 = arith.constant 0 : i32
    return %c0_i32, %c0_i32_0 : i32, i32
  }
  func.func @transform_2(%arg0: i32) -> (i32, i32) {
    %c0_i32 = arith.constant 0 : i32
    %c0_i32_0 = arith.constant 0 : i32
    return %arg0, %c0_i32 : i32, i32
  }
}

</mosaic_0001>

<llo_original>
// kernel: tpu_custom_call.1
$region0: #{tpu_custom_call.1}
  #allocation0 [shape = 'u32[]', space=smem, size = 0x4, offset = 0x4, fixed_abs, tag = 'smem constant byte address 0x4 - core index']
  #allocation1 [shape = 'u32[144,128]{1,0:T(1,128)}', space=vmem, size = 0x12000, scoped, tag = 'internal scratch']
  %s0 = inlined_call_operand.vmem [shape: f32[16,8], index: 0, kind: input, shape index: {}]
  %s1 = inlined_call_operand.vmem [shape: f32[8,128], index: 1, kind: input, shape index: {}]
  %s2 = inlined_call_operand.hbm [shape: f32[16,256], index: 2, kind: output, shape index: {}]
  %s3 = sld [smem:[#allocation0]]
  $region18: #{tpu_custom_call.1} parent=0
    _
  %s5 = ssub.s32 1, %s3
  %s6 = scalar_select 0, %s5, %s3
  $region1: #{tpu_custom_call.1} parent=0
    #allocation2 [shape = 'u8[16384]{0}', space=vmem, size = 0x4000, scoped, tag = 'output window, operand 0, single buffered']
    #allocation3 [shape = 's32[1]{0}', space=sflag, size = 0x4, scoped, tag = 'scoped memory for tpu_custom_call.1']
    %7 = vsyncpa [#allocation3], 0
    // Predicated region
    $region2: #{tpu_custom_call.1} parent=1 // pred_check
      _
    $region3: #{tpu_custom_call.1} parent=1 // pred_check_branch
      %9 = sbr.rel (0) target = $region5
    $region4: #{tpu_custom_call.1} parent=1 // pred_region
      _
    $region5: #{tpu_custom_call.1} parent=1 // pred_fallthru
      _
    // Predicated region
    $region6: #{tpu_custom_call.1} parent=1 // pred_check
      _
    $region7: #{tpu_custom_call.1} parent=1 // pred_check_branch
      %11 = sbr.rel (0) target = $region9
    $region8: #{tpu_custom_call.1} parent=1 // pred_region
      _
    $region9: #{tpu_custom_call.1} parent=1 // pred_fallthru
      _
    %v12 = vld [vmem:[%s0] sm:$0xff]
    %v13 = vld [vmem:[%s0 + $0x8] sm:$0xff]
    %v14 = vld [vmem:[%s1] sm:$0xff]
    %vm15 = vcmask 64512
    %v17 = vsel %vm15, %v12, 0
    %v20 = vsel %vm15, %v13, 0
    %22 = vmatprep.subr.mxu0 0.0
    %23 = vmatpush1.msra.mxu0 0.0
    %24 = vmatprep.subr.mxu0 0.0
    %25 = vmatpush1.msra.mxu0 0.0
    %26 = vmatprep.subr.mxu0 0.0
    %27 = vmatpush1.msra.mxu0 0.0
    %28 = vmatprep.subr.mxu0 0.0
    %29 = vmatpush1.msra.mxu0 0.0
    %30 = vmatprep.subr.mxu0 0.0
    %31 = vmatpush1.msra.mxu0 0.0
    %32 = vmatprep.subr.mxu0 0.0
    %33 = vmatpush1.msra.mxu0 0.0
    %34 = vmatprep.subr.mxu0 0.0
    %35 = vmatpush1.msra.mxu0 0.0
    %36 = vmatprep.subr.mxu0 0.0
    %37 = vmatpush1.msra.mxu0 0.0
    %38 = vmatprep.subr.mxu0 0.0
    %39 = vmatpush1.msra.mxu0 0.0
    %40 = vmatprep.subr.mxu0 0.0
    %41 = vmatpush1.msra.mxu0 0.0
    %42 = vmatprep.subr.mxu0 0.0
    %43 = vmatpush1.msra.mxu0 0.0
    %44 = vmatprep.subr.mxu0 0.0
    %45 = vmatpush1.msra.mxu0 0.0
    %46 = vmatprep.subr.mxu0 0.0
    %47 = vmatpush1.msra.mxu0 0.0
    %48 = vmatprep.subr.mxu0 0.0
    %49 = vmatpush1.msra.mxu0 0.0
    %50 = vmatprep.subr.mxu0 0.0
    %51 = vmatpush1.msra.mxu0 0.0
    %52 = vmatprep.subr.mxu0 0.0
    %53 = vmatpush1.msra.mxu0 %v14
    %54 = vmatprep.subr.mxu0 0.0
    %55 = vmatpush2.msra.mxu0 0.0
    %56 = vmatprep.subr.mxu0 0.0
    %57 = vmatpush2.msra.mxu0 0.0
    %58 = vmatprep.subr.mxu0 0.0
    %59 = vmatpush2.msra.mxu0 0.0
    %60 = vmatprep.subr.mxu0 0.0
    %61 = vmatpush2.msra.mxu0 0.0
    %62 = vmatprep.subr.mxu0 0.0
    %63 = vmatpush2.msra.mxu0 0.0
    %64 = vmatprep.subr.mxu0 0.0
    %65 = vmatpush2.msra.mxu0 0.0
    %66 = vmatprep.subr.mxu0 0.0
    %67 = vmatpush2.msra.mxu0 0.0
    %68 = vmatprep.subr.mxu0 0.0
    %69 = vmatpush2.msra.mxu0 0.0
    %70 = vmatprep.subr.mxu0 0.0
    %71 = vmatpush2.msra.mxu0 0.0
    %72 = vmatprep.subr.mxu0 0.0
    %73 = vmatpush2.msra.mxu0 0.0
    %74 = vmatprep.subr.mxu0 0.0
    %75 = vmatpush2.msra.mxu0 0.0
    %76 = vmatprep.subr.mxu0 0.0
    %77 = vmatpush2.msra.mxu0 0.0
    %78 = vmatprep.subr.mxu0 0.0
    %79 = vmatpush2.msra.mxu0 0.0
    %80 = vmatprep.subr.mxu0 0.0
    %81 = vmatpush2.msra.mxu0 0.0
    %82 = vmatprep.subr.mxu0 0.0
    %83 = vmatpush2.msra.mxu0 0.0
    %84 = vmatprep.subr.mxu0 0.0
    %85 = vmatpush2.msra.mxu0 0.0
    %86 = vmatprep.mubr.f32.mxu0 0.0
    %87 = vmatmul.mubr.f32.gmra.mxu0 %v17
    %v88 = vpop.f32.mrf.mxu0
    %v89 = vadd.f32 0.0, %v88
    %v90 = vpop.f32.mrf.mxu0
    %91 = vmatprep.mubr.f32.mxu0 0.0
    %92 = vmatmul.mubr.f32.gmra.mxu0 %v20
    %v93 = vpop.f32.mrf.mxu0
    %v94 = vadd.f32 0.0, %v93
    %v95 = vpop.f32.mrf.mxu0
    %96 = vdwg.mxu0
    %v97 = vand.u32 2147483647, %v89
    %vm98 = vcmp.le.f32.partialorder %v97, 0.7853982
    %vm99 = vcmp.lt.s32.totalorder %v89, 0
    %v100 = vand.u32 %v89, 2139095040
    %v101 = vshrl.u32 %v100, 23
    %v102 = vsub.s32 %v101, 127
    %v103 = vand.u32 2147483647, %v89
    %v104 = vand.u32 %v103, 8388607
    %v105 = vor.u32 %v104, 8388608
    %v106 = vsub.s32 0, %v105
    %v107 = vadd.s32 %v102, 1
    %vm108 = vcmp.gt.s32.totalorder %v107, 0
    %v109 = vsel %vm108, %v107, 0
    %v110 = vshrl.u32 %v109, 5
    %v111 = vand.u32 %v109, 31
    %v112 = vsub.s32 32, %v111
    %v113 = vshrl.u32 683565275, %v112
    %v114 = vshll.u32 683565275, %v111
    %v115 = vshrl.u32 2475754826, %v112
    %v116 = vor.u32 %v114, %v115
    %v117 = vshll.u32 2475754826, %v111
    %v118 = vshrl.u32 2131351028, %v112
    %v119 = vor.u32 %v117, %v118
    %v120 = vshll.u32 2131351028, %v111
    %v121 = vshrl.u32 2102212464, %v112
    %v122 = vor.u32 %v120, %v121
    %v123 = vshll.u32 2102212464, %v111
    %v124 = vshrl.u32 920167782, %v112
    %v125 = vor.u32 %v123, %v124
    %v126 = vshll.u32 920167782, %v111
    %v127 = vshrl.u32 1326507024, %v112
    %v128 = vor.u32 %v126, %v127
    %vm129 = vcmp.lt.s32.totalorder %v110, 1
    %vm130 = vcmp.lt.s32.totalorder %v110, 2
    %vm131 = vcmp.lt.s32.totalorder %v110, 3
    %vm132 = vcmp.lt.s32.totalorder %v110, 4
    %v133 = vsel %vm129, %v113, %v116
    %v134 = vsel %vm132, %v122, 2102212464
    %v135 = vsel %vm131, %v119, %v134
    %v136 = vsel %vm130, %v133, %v135
    %v137 = vsel %vm129, %v116, %v119
    %v138 = vsel %vm132, %v125, 920167782
    %v139 = vsel %vm131, %v122, %v138
    %v140 = vsel %vm130, %v137, %v139
    %v141 = vsel %vm129, %v119, %v122
    %v142 = vsel %vm132, %v128, 1326507024
    %v143 = vsel %vm131, %v125, %v142
    %v144 = vsel %vm130, %v141, %v143
    %v145 = vshll.u32 %v105, 8
    %v146 = vmul.u32.u64.compose %v145, %v144
    %v147 = vextract.low.u32 %v146
    %v148 = vextract.high.u32 %v146
    %v149 = vmul.u32.u64.compose %v145, %v140
    %v150 = vextract.low.u32 %v149
    %v151 = vextract.high.u32 %v149
    %v152 = vmul.u32 %v145, %v136
    %v153 = vadd.s32 %v148, %v150
    %vm154 = vc.u32 %v148, %v150
    %v155 = vadd.s32 %v151, 1
    %v156 = vsel %vm154, %v155, %v151
    %v157 = vadd.s32 %v152, %v156
    %v158 = vadd.s32 %v157, 536870912
    %v159 = vshrl.u32 %v158, 30
    %v160 = vshll.u32 %v159, 30
    %v161 = vsub.s32 %v157, %v160
    %vm162 = vcmp.lt.s32.totalorder %v161, 0
    %v163 = vsub.s32 0, %v161
    %v164 = vsel %vm162, %v163, %v161
    %v165 = vclz %v164
    %v166 = vsub.s32 %v165, 2
    %vm167 = vcmp.gt.s32.totalorder 0, %v166
    %v168 = vsel %vm167, 0, %v166
    %v169 = vsub.s32 32, %v168
    %v170 = vshll.u32 %v161, %v168
    %v171 = vshrl.u32 %v153, %v169
    %v172 = vor.u32 %v170, %v171
    %v173 = vsub.s32 4294967266, %v168
    %v174 = vadd.s32 %v173, 127
    %v175 = vshll.u32 %v174, 23
    %v176 = vor.u32 4788187, %v175
    %v177 = vand.u32 2147483647, %v176
    %v179 = vcvt.s32.f32 %v172
    %v180 = vmul.f32 %v179, %v177
    %v181 = vxor.u32 %v180, 2147483648
    %v182 = vsel %vm99, %v181, %v180
    %v183 = vsub.s32 4, %v159
    %v184 = vsel %vm99, %v183, %v159
    %v185 = vsel %vm98, %v89, %v182
    %v186 = vsel %vm98, 0, %v184
    %v187 = vcosq.f32.pop %v185
    %v188 = vsinq.f32.pop %v185
    %vm189 = vweird.f32 %v89
    %v190 = vadd.s32 %v186, 3
    %v191 = vand.u32 %v190, 3
    %vm192 = vcmp.lt.s32.totalorder %v191, 2
    %vm193 = vcmp.eq.s32.totalorder %v191, 0
    %v194 = vxor.u32 %v188, 2147483648
    %v195 = vsel %vm193, %v187, %v194
    %vm196 = vcmp.eq.s32.totalorder %v191, 2
    %v197 = vxor.u32 %v187, 2147483648
    %v198 = vsel %vm196, %v197, %v188
    %v199 = vsel %vm192, %v195, %v198
    %v200 = vsel %vm189, nan, %v199
    %v201 = vand.u32 2147483647, %v94
    %vm202 = vcmp.le.f32.partialorder %v201, 0.7853982
    %vm203 = vcmp.lt.s32.totalorder %v94, 0
    %v204 = vand.u32 %v94, 2139095040
    %v205 = vshrl.u32 %v204, 23
    %v206 = vsub.s32 %v205, 127
    %v207 = vand.u32 2147483647, %v94
    %v208 = vand.u32 %v207, 8388607
    %v209 = vor.u32 %v208, 8388608
    %v210 = vsub.s32 0, %v209
    %v211 = vadd.s32 %v206, 1
    %vm212 = vcmp.gt.s32.totalorder %v211, 0
    %v213 = vsel %vm212, %v211, 0
    %v214 = vshrl.u32 %v213, 5
    %v215 = vand.u32 %v213, 31
    %v216 = vsub.s32 32, %v215
    %v217 = vshrl.u32 683565275, %v216
    %v218 = vshll.u32 683565275, %v215
    %v219 = vshrl.u32 2475754826, %v216
    %v220 = vor.u32 %v218, %v219
    %v221 = vshll.u32 2475754826, %v215
    %v222 = vshrl.u32 2131351028, %v216
    %v223 = vor.u32 %v221, %v222
    %v224 = vshll.u32 2131351028, %v215
    %v225 = vshrl.u32 2102212464, %v216
    %v226 = vor.u32 %v224, %v225
    %v227 = vshll.u32 2102212464, %v215
    %v228 = vshrl.u32 920167782, %v216
    %v229 = vor.u32 %v227, %v228
    %v230 = vshll.u32 920167782, %v215
    %v231 = vshrl.u32 1326507024, %v216
    %v232 = vor.u32 %v230, %v231
    %vm233 = vcmp.lt.s32.totalorder %v214, 1
    %vm234 = vcmp.lt.s32.totalorder %v214, 2
    %vm235 = vcmp.lt.s32.totalorder %v214, 3
    %vm236 = vcmp.lt.s32.totalorder %v214, 4
    %v237 = vsel %vm233, %v217, %v220
    %v238 = vsel %vm236, %v226, 2102212464
    %v239 = vsel %vm235, %v223, %v238
    %v240 = vsel %vm234, %v237, %v239
    %v241 = vsel %vm233, %v220, %v223
    %v242 = vsel %vm236, %v229, 920167782
    %v243 = vsel %vm235, %v226, %v242
    %v244 = vsel %vm234, %v241, %v243
    %v245 = vsel %vm233, %v223, %v226
    %v246 = vsel %vm236, %v232, 1326507024
    %v247 = vsel %vm235, %v229, %v246
    %v248 = vsel %vm234, %v245, %v247
    %v249 = vshll.u32 %v209, 8
    %v250 = vmul.u32.u64.compose %v249, %v248
    %v251 = vextract.low.u32 %v250
    %v252 = vextract.high.u32 %v250
    %v253 = vmul.u32.u64.compose %v249, %v244
    %v254 = vextract.low.u32 %v253
    %v255 = vextract.high.u32 %v253
    %v256 = vmul.u32 %v249, %v240
    %v257 = vadd.s32 %v252, %v254
    %vm258 = vc.u32 %v252, %v254
    %v259 = vadd.s32 %v255, 1
    %v260 = vsel %vm258, %v259, %v255
    %v261 = vadd.s32 %v256, %v260
    %v262 = vadd.s32 %v261, 536870912
    %v263 = vshrl.u32 %v262, 30
    %v264 = vshll.u32 %v263, 30
    %v265 = vsub.s32 %v261, %v264
    %vm266 = vcmp.lt.s32.totalorder %v265, 0
    %v267 = vsub.s32 0, %v265
    %v268 = vsel %vm266, %v267, %v265
    %v269 = vclz %v268
    %v270 = vsub.s32 %v269, 2
    %vm271 = vcmp.gt.s32.totalorder 0, %v270
    %v272 = vsel %vm271, 0, %v270
    %v273 = vsub.s32 32, %v272
    %v274 = vshll.u32 %v265, %v272
    %v275 = vshrl.u32 %v257, %v273
    %v276 = vor.u32 %v274, %v275
    %v277 = vsub.s32 4294967266, %v272
    %v278 = vadd.s32 %v277, 127
    %v279 = vshll.u32 %v278, 23
    %v280 = vor.u32 4788187, %v279
    %v281 = vand.u32 2147483647, %v280
    %v283 = vcvt.s32.f32 %v276
    %v284 = vmul.f32 %v283, %v281
    %v285 = vxor.u32 %v284, 2147483648
    %v286 = vsel %vm203, %v285, %v284
    %v287 = vsub.s32 4, %v263
    %v288 = vsel %vm203, %v287, %v263
    %v289 = vsel %vm202, %v94, %v286
    %v290 = vsel %vm202, 0, %v288
    %v291 = vcosq.f32.pop %v289
    %v292 = vsinq.f32.pop %v289
    %vm293 = vweird.f32 %v94
    %v294 = vadd.s32 %v290, 3
    %v295 = vand.u32 %v294, 3
    %vm296 = vcmp.lt.s32.totalorder %v295, 2
    %vm297 = vcmp.eq.s32.totalorder %v295, 0
    %v298 = vxor.u32 %v292, 2147483648
    %v299 = vsel %vm297, %v291, %v298
    %vm300 = vcmp.eq.s32.totalorder %v295, 2
    %v301 = vxor.u32 %v291, 2147483648
    %v302 = vsel %vm300, %v301, %v292
    %v303 = vsel %vm296, %v299, %v302
    %v304 = vsel %vm293, nan, %v303
    %305 = vst [vmem:[#allocation2] sm:$0xff] %v200
    %306 = vst [vmem:[#allocation2 + $0x10] sm:$0xff] %v304
    %v307 = vand.u32 2147483647, %v89
    %vm308 = vcmp.le.f32.partialorder %v307, 0.7853982
    %vm309 = vcmp.lt.s32.totalorder %v89, 0
    %v310 = vand.u32 %v89, 2139095040
    %v311 = vshrl.u32 %v310, 23
    %v312 = vsub.s32 %v311, 127
    %v313 = vand.u32 2147483647, %v89
    %v314 = vand.u32 %v313, 8388607
    %v315 = vor.u32 %v314, 8388608
    %v316 = vsub.s32 0, %v315
    %v317 = vadd.s32 %v312, 1
    %vm318 = vcmp.gt.s32.totalorder %v317, 0
    %v319 = vsel %vm318, %v317, 0
    %v320 = vshrl.u32 %v319, 5
    %v321 = vand.u32 %v319, 31
    %v322 = vsub.s32 32, %v321
    %v323 = vshrl.u32 683565275, %v322
    %v324 = vshll.u32 683565275, %v321
    %v325 = vshrl.u32 2475754826, %v322
    %v326 = vor.u32 %v324, %v325
    %v327 = vshll.u32 2475754826, %v321
    %v328 = vshrl.u32 2131351028, %v322
    %v329 = vor.u32 %v327, %v328
    %v330 = vshll.u32 2131351028, %v321
    %v331 = vshrl.u32 2102212464, %v322
    %v332 = vor.u32 %v330, %v331
    %v333 = vshll.u32 2102212464, %v321
    %v334 = vshrl.u32 920167782, %v322
    %v335 = vor.u32 %v333, %v334
    %v336 = vshll.u32 920167782, %v321
    %v337 = vshrl.u32 1326507024, %v322
    %v338 = vor.u32 %v336, %v337
    %vm339 = vcmp.lt.s32.totalorder %v320, 1
    %vm340 = vcmp.lt.s32.totalorder %v320, 2
    %vm341 = vcmp.lt.s32.totalorder %v320, 3
    %vm342 = vcmp.lt.s32.totalorder %v320, 4
    %v343 = vsel %vm339, %v323, %v326
    %v344 = vsel %vm342, %v332, 2102212464
    %v345 = vsel %vm341, %v329, %v344
    %v346 = vsel %vm340, %v343, %v345
    %v347 = vsel %vm339, %v326, %v329
    %v348 = vsel %vm342, %v335, 920167782
    %v349 = vsel %vm341, %v332, %v348
    %v350 = vsel %vm340, %v347, %v349
    %v351 = vsel %vm339, %v329, %v332
    %v352 = vsel %vm342, %v338, 1326507024
    %v353 = vsel %vm341, %v335, %v352
    %v354 = vsel %vm340, %v351, %v353
    %v355 = vshll.u32 %v315, 8
    %v356 = vmul.u32.u64.compose %v355, %v354
    %v357 = vextract.low.u32 %v356
    %v358 = vextract.high.u32 %v356
    %v359 = vmul.u32.u64.compose %v355, %v350
    %v360 = vextract.low.u32 %v359
    %v361 = vextract.high.u32 %v359
    %v362 = vmul.u32 %v355, %v346
    %v363 = vadd.s32 %v358, %v360
    %vm364 = vc.u32 %v358, %v360
    %v365 = vadd.s32 %v361, 1
    %v366 = vsel %vm364, %v365, %v361
    %v367 = vadd.s32 %v362, %v366
    %v368 = vadd.s32 %v367, 536870912
    %v369 = vshrl.u32 %v368, 30
    %v370 = vshll.u32 %v369, 30
    %v371 = vsub.s32 %v367, %v370
    %vm372 = vcmp.lt.s32.totalorder %v371, 0
    %v373 = vsub.s32 0, %v371
    %v374 = vsel %vm372, %v373, %v371
    %v375 = vclz %v374
    %v376 = vsub.s32 %v375, 2
    %vm377 = vcmp.gt.s32.totalorder 0, %v376
    %v378 = vsel %vm377, 0, %v376
    %v379 = vsub.s32 32, %v378
    %v380 = vshll.u32 %v371, %v378
    %v381 = vshrl.u32 %v363, %v379
    %v382 = vor.u32 %v380, %v381
    %v383 = vsub.s32 4294967266, %v378
    %v384 = vadd.s32 %v383, 127
    %v385 = vshll.u32 %v384, 23
    %v386 = vor.u32 4788187, %v385
    %v387 = vand.u32 2147483647, %v386
    %v389 = vcvt.s32.f32 %v382
    %v390 = vmul.f32 %v389, %v387
    %v391 = vxor.u32 %v390, 2147483648
    %v392 = vsel %vm309, %v391, %v390
    %v393 = vsub.s32 4, %v369
    %v394 = vsel %vm309, %v393, %v369
    %v395 = vsel %vm308, %v89, %v392
    %v396 = vsel %vm308, 0, %v394
    %v397 = vcosq.f32.pop %v395
    %v398 = vsinq.f32.pop %v395
    %vm399 = vweird.f32 %v89
    %v400 = vand.u32 %v396, 3
    %vm401 = vcmp.lt.s32.totalorder %v400, 2
    %vm402 = vcmp.eq.s32.totalorder %v400, 0
    %v403 = vxor.u32 %v398, 2147483648
    %v404 = vsel %vm402, %v397, %v403
    %vm405 = vcmp.eq.s32.totalorder %v400, 2
    %v406 = vxor.u32 %v397, 2147483648
    %v407 = vsel %vm405, %v406, %v398
    %v408 = vsel %vm401, %v404, %v407
    %v409 = vsel %vm399, nan, %v408
    %v410 = vand.u32 2147483647, %v94
    %vm411 = vcmp.le.f32.partialorder %v410, 0.7853982
    %vm412 = vcmp.lt.s32.totalorder %v94, 0
    %v413 = vand.u32 %v94, 2139095040
    %v414 = vshrl.u32 %v413, 23
    %v415 = vsub.s32 %v414, 127
    %v416 = vand.u32 2147483647, %v94
    %v417 = vand.u32 %v416, 8388607
    %v418 = vor.u32 %v417, 8388608
    %v419 = vsub.s32 0, %v418
    %v420 = vadd.s32 %v415, 1
    %vm421 = vcmp.gt.s32.totalorder %v420, 0
    %v422 = vsel %vm421, %v420, 0
    %v423 = vshrl.u32 %v422, 5
    %v424 = vand.u32 %v422, 31
    %v425 = vsub.s32 32, %v424
    %v426 = vshrl.u32 683565275, %v425
    %v427 = vshll.u32 683565275, %v424
    %v428 = vshrl.u32 2475754826, %v425
    %v429 = vor.u32 %v427, %v428
    %v430 = vshll.u32 2475754826, %v424
    %v431 = vshrl.u32 2131351028, %v425
    %v432 = vor.u32 %v430, %v431
    %v433 = vshll.u32 2131351028, %v424
    %v434 = vshrl.u32 2102212464, %v425
    %v435 = vor.u32 %v433, %v434
    %v436 = vshll.u32 2102212464, %v424
    %v437 = vshrl.u32 920167782, %v425
    %v438 = vor.u32 %v436, %v437
    %v439 = vshll.u32 920167782, %v424
    %v440 = vshrl.u32 1326507024, %v425
    %v441 = vor.u32 %v439, %v440
    %vm442 = vcmp.lt.s32.totalorder %v423, 1
    %vm443 = vcmp.lt.s32.totalorder %v423, 2
    %vm444 = vcmp.lt.s32.totalorder %v423, 3
    %vm445 = vcmp.lt.s32.totalorder %v423, 4
    %v446 = vsel %vm442, %v426, %v429
    %v447 = vsel %vm445, %v435, 2102212464
    %v448 = vsel %vm444, %v432, %v447
    %v449 = vsel %vm443, %v446, %v448
    %v450 = vsel %vm442, %v429, %v432
    %v451 = vsel %vm445, %v438, 920167782
    %v452 = vsel %vm444, %v435, %v451
    %v453 = vsel %vm443, %v450, %v452
    %v454 = vsel %vm442, %v432, %v435
    %v455 = vsel %vm445, %v441, 1326507024
    %v456 = vsel %vm444, %v438, %v455
    %v457 = vsel %vm443, %v454, %v456
    %v458 = vshll.u32 %v418, 8
    %v459 = vmul.u32.u64.compose %v458, %v457
    %v460 = vextract.low.u32 %v459
    %v461 = vextract.high.u32 %v459
    %v462 = vmul.u32.u64.compose %v458, %v453
    %v463 = vextract.low.u32 %v462
    %v464 = vextract.high.u32 %v462
    %v465 = vmul.u32 %v458, %v449
    %v466 = vadd.s32 %v461, %v463
    %vm467 = vc.u32 %v461, %v463
    %v468 = vadd.s32 %v464, 1
    %v469 = vsel %vm467, %v468, %v464
    %v470 = vadd.s32 %v465, %v469
    %v471 = vadd.s32 %v470, 536870912
    %v472 = vshrl.u32 %v471, 30
    %v473 = vshll.u32 %v472, 30
    %v474 = vsub.s32 %v470, %v473
    %vm475 = vcmp.lt.s32.totalorder %v474, 0
    %v476 = vsub.s32 0, %v474
    %v477 = vsel %vm475, %v476, %v474
    %v478 = vclz %v477
    %v479 = vsub.s32 %v478, 2
    %vm480 = vcmp.gt.s32.totalorder 0, %v479
    %v481 = vsel %vm480, 0, %v479
    %v482 = vsub.s32 32, %v481
    %v483 = vshll.u32 %v474, %v481
    %v484 = vshrl.u32 %v466, %v482
    %v485 = vor.u32 %v483, %v484
    %v486 = vsub.s32 4294967266, %v481
    %v487 = vadd.s32 %v486, 127
    %v488 = vshll.u32 %v487, 23
    %v489 = vor.u32 4788187, %v488
    %v490 = vand.u32 2147483647, %v489
    %v492 = vcvt.s32.f32 %v485
    %v493 = vmul.f32 %v492, %v490
    %v494 = vxor.u32 %v493, 2147483648
    %v495 = vsel %vm412, %v494, %v493
    %v496 = vsub.s32 4, %v472
    %v497 = vsel %vm412, %v496, %v472
    %v498 = vsel %vm411, %v94, %v495
    %v499 = vsel %vm411, 0, %v497
    %v500 = vcosq.f32.pop %v498
    %v501 = vsinq.f32.pop %v498
    %vm502 = vweird.f32 %v94
    %v503 = vand.u32 %v499, 3
    %vm504 = vcmp.lt.s32.totalorder %v503, 2
    %vm505 = vcmp.eq.s32.totalorder %v503, 0
    %v506 = vxor.u32 %v501, 2147483648
    %v507 = vsel %vm505, %v500, %v506
    %vm508 = vcmp.eq.s32.totalorder %v503, 2
    %v509 = vxor.u32 %v500, 2147483648
    %v510 = vsel %vm508, %v509, %v501
    %v511 = vsel %vm504, %v507, %v510
    %v512 = vsel %vm502, nan, %v511
    %513 = vst [vmem:[#allocation2 + $0x8] sm:$0xff] %v409
    %514 = vst [vmem:[#allocation2 + $0x18] sm:$0xff] %v512
    // Predicated region
    $region10: #{tpu_custom_call.1} parent=1 // pred_check
      _
    $region11: #{tpu_custom_call.1} parent=1 // pred_check_branch
      %516 = sbr.rel (0) target = $region13
    $region12: #{tpu_custom_call.1} parent=1 // pred_region
      %s518 = ssub.s32 512, 512
      %519 = vsyncadd [#allocation3], %s518
      %s520 = sshll.u32 [#allocation2], 4
      %s521 = int_to_ptr.vmem [resolvable:$true] %s520
      %526 = dma.vmem_to_hbm [thread:$0]  %s521, 512, %s2, [#allocation3], 256, 256, 16
    $region13: #{tpu_custom_call.1} parent=1 // pred_fallthru
      _
    // Predicated region
    $region14: #{tpu_custom_call.1} parent=1 // pred_check
      _
    $region15: #{tpu_custom_call.1} parent=1 // pred_check_branch
      %528 = sbr.rel (0) target = $region17
    $region16: #{tpu_custom_call.1} parent=1 // pred_region
      %529 = dma.done [#allocation3], 512
    $region17: #{tpu_custom_call.1} parent=1 // pred_fallthru
      _
    %530 = vsyncpa [#allocation3], 1

</llo_original>
